<compile_context>
chip_gen: v7x
topology: tpu7x:2x2x1
jax: 0.10.0
libtpu: 0.0.40
codegen_flags: <defaults>
</compile_context>

<pallas_src>
import functools

import jax
import jax.numpy as jnp
from jax.experimental import pallas as pl
from jax.experimental.pallas import tpu as pltpu


_TARGET_GRID_STEPS = 8           # >= 4 steps per TensorCore on v7x's 2 TCs
_MIN_STREAM_BYTES = 512 * 1024   # keep per-stream blocks >= ~512 KiB when B allows


# ---------------------------------------------------------------------------
# Fused single-pass kernel: one batch block per grid step.
# ---------------------------------------------------------------------------
def _affm_fused_kernel(f_ref, fe_ref, fd_ref, w_ref, o_ref, *, hw, d):
    """f/fe/fd/o: [bblk, C, HW] (I/O dtype).  w: [C, d + 3*(d//2)] f32 packed:
    columns [:d] = conv_du weight transposed, then the three fcs weights."""
    d2 = d // 2
    io_dt = o_ref.dtype

    # Batched spatial mean of (f + f_e + f_d): three lane reductions with f32
    # accumulation; the sum u is never materialized.              -> [bblk, C, 1]
    s = (jnp.sum(f_ref[...], axis=-1, keepdims=True, dtype=jnp.float32)
         + jnp.sum(fe_ref[...], axis=-1, keepdims=True, dtype=jnp.float32)
         + jnp.sum(fd_ref[...], axis=-1, keepdims=True, dtype=jnp.float32)
         ) * (1.0 / hw)

    w = w_ref[...]                                                 # [C, d+3*d2]

    # conv_du 1x1 (C -> d, bias-free) on the pooled map + SimpleGate, batched.
    z_pre = jnp.sum(s * w[:, :d], axis=1, keepdims=True)           # [bblk, 1, d]
    z = z_pre[..., :d2] * z_pre[..., d2:]                          # [bblk, 1, d2]

    # fcs[0..2] (d2 -> C) fused into one [bblk, C, 3] logits tile (lane concat
    # of three tiny [bblk, C, 1] lane-reductions, done once per grid step).
    logits = jnp.concatenate(
        [jnp.sum(z * w[:, d + i * d2: d + (i + 1) * d2], axis=-1, keepdims=True)
         for i in range(3)],
        axis=-1)                                                   # [bblk, C, 3]

    # Softmax over channels (dim=1 of the module), exact division.
    m = jnp.max(logits, axis=1, keepdims=True)                     # [bblk, 1, 3]
    e = jnp.exp(logits - m)
    a = (e / jnp.sum(e, axis=1, keepdims=True)).astype(io_dt)      # [bblk, C, 3]

    # Fused weighted combine in the I/O dtype (f32 inputs -> f32 math,
    # bf16 inputs -> bf16 VALU on v6e/v7x).
    o_ref[...] = (a[:, :, 0:1] * f_ref[...]
                  + a[:, :, 1:2] * fe_ref[...]
                  + a[:, :, 2:3] * fd_ref[...]).astype(io_dt)


# ---------------------------------------------------------------------------
# Spatially-tiled two-pass path (large H*W).
# ---------------------------------------------------------------------------
def _affm_sum_kernel(f_ref, fe_ref, fd_ref, s_ref, *, hw, hwt, need_mask):
    """Pass 1: accumulate sum_{spatial}(f + fe + fd) per (batch, channel) into a
    resident [1, C, 1] f32 output block over the spatial ('arbitrary') axis."""
    si = pl.program_id(1)

    @pl.when(si == 0)
    def _():
        s_ref[...] = jnp.zeros_like(s_ref)

    def tile_sum(ref):
        x = ref[...]                                               # [1, C, hwt]
        if need_mask:
            lane = jax.lax.broadcasted_iota(jnp.int32, x.shape, 2) + si * hwt
            x = jnp.where(lane < hw, x, jnp.zeros_like(x))
        return jnp.sum(x, axis=-1, keepdims=True, dtype=jnp.float32)

    s_ref[...] += tile_sum(f_ref) + tile_sum(fe_ref) + tile_sum(fd_ref)


def _affm_apply_kernel(a_ref, f_ref, fe_ref, fd_ref, o_ref):
    """Pass 2: out = a0*f + a1*fe + a2*fd on one [1, C, hwt] spatial tile."""
    a = a_ref[...].astype(o_ref.dtype)                             # [1, C, 3]
    o_ref[...] = (a[:, :, 0:1] * f_ref[...]
                  + a[:, :, 1:2] * fe_ref[...]
                  + a[:, :, 2:3] * fd_ref[...]).astype(o_ref.dtype)


# ---------------------------------------------------------------------------
# Wrapper
# ---------------------------------------------------------------------------
def affm_pallas(f, fe, fd, w1, wf, *,
                vmem_budget_bytes=24 * 1024 * 1024,
                batch_block=None):
    """AFFM forward.

    f, fe, fd : [B, C, H, W]  feature maps.  The kernel runs in whatever dtype
                arrives (use bf16 only if it already comes from upstream as
                bf16 -- the wrapper never casts in HBM).
    w1        : [d, C]        conv_du 1x1 weight (bias=False).
    wf        : [3, C, d//2]  fcs[i] 1x1 weights (bias=False).
    vmem_budget_bytes: I/O double-buffer budget (24 MiB is v7x-safe; may be
                raised to ~48-64 MiB on v5e/v6e).
    batch_block: optional explicit batch-block size (testing knob).
    """
    B, C, H, W = f.shape
    HW = H * W
    d = int(w1.shape[0])
    d2 = d // 2
    assert fe.shape == f.shape and fd.shape == f.shape
    assert fe.dtype == f.dtype and fd.dtype == f.dtype

    io_dt = f.dtype
    io_it = jnp.dtype(io_dt).itemsize

    f3 = f.reshape(B, C, HW)
    fe3 = fe.reshape(B, C, HW)
    fd3 = fd.reshape(B, C, HW)

    per_stream = C * HW * io_it                     # one batch, one tensor
    per_stream_f32 = C * HW * 4
    # 4 I/O streams double-buffered + ~2 f32 tiles of in-kernel temporaries.
    per_batch_vmem = 2 * 4 * per_stream + 2 * per_stream_f32

    # Packed 1x1 weights (f32, lane-dense): [:, :d] = w1^T, then fcs[0..2].
    w1t = jnp.transpose(w1).astype(jnp.float32)                         # [C, d]
    wfl = jnp.transpose(wf, (1, 0, 2)).reshape(C, 3 * d2).astype(jnp.float32)
    wpack = jnp.concatenate([w1t, wfl], axis=-1)                        # [C, d+3*d2]
    wbytes = 2 * wpack.size * 4

    fused_fits = per_batch_vmem + wbytes <= vmem_budget_bytes

    if batch_block is not None or fused_fits:
        # ------------------------- fused single-pass path -------------------
        if batch_block is not None:
            bblk = max(1, min(int(batch_block), B))
        else:
            cap = max(1, (vmem_budget_bytes - wbytes) // per_batch_vmem)
            size_floor = max(1, _MIN_STREAM_BYTES // per_stream)
            steps_cap = max(1, B // min(_TARGET_GRID_STEPS, B))
            bblk = min(B, cap, size_floor, steps_cap)
        grid_b = pl.cdiv(B, bblk)      # ragged last block handled by Pallas OOB rules

        vmem_need = bblk * per_batch_vmem + wbytes + (1 << 20)
        vmem_limit = int(max(vmem_need, 32 * 1024 * 1024))

        kernel = functools.partial(_affm_fused_kernel, hw=float(HW), d=d)
        cost = pl.CostEstimate(
            flops=8 * B * C * HW,
            transcendentals=3 * B * C,
            bytes_accessed=4 * B * C * HW * io_it + wpack.size * 4,
        )
        out3 = pl.pallas_call(
            kernel,
            out_shape=jax.ShapeDtypeStruct((B, C, HW), io_dt),
            grid_spec=pltpu.PrefetchScalarGridSpec(
                num_scalar_prefetch=0,
                grid=(grid_b,),
                in_specs=[
                    pl.BlockSpec((bblk, C, HW), lambda i: (i, 0, 0)),
                    pl.BlockSpec((bblk, C, HW), lambda i: (i, 0, 0)),
                    pl.BlockSpec((bblk, C, HW), lambda i: (i, 0, 0)),
                    pl.BlockSpec((C, d + 3 * d2), lambda i: (0, 0)),
                ],
                out_specs=pl.BlockSpec((bblk, C, HW), lambda i: (i, 0, 0)),
            ),
            compiler_params=pltpu.CompilerParams(
                dimension_semantics=("parallel",),
                vmem_limit_bytes=vmem_limit,
            ),
            cost_estimate=cost,
        )(f3, fe3, fd3, wpack)
        return out3.reshape(B, C, H, W)

    # ---------------- spatially-tiled two-pass path (large H*W) -------------
    # Spatial tile: ~1 MiB per stream, bounded by the budget, multiple of 128.
    bytes_per_lane = 2 * 4 * C * io_it + 2 * C * 4
    hwt = min(max(1, vmem_budget_bytes // bytes_per_lane),
              max(1, (1024 * 1024) // (C * io_it)))
    hwt = max(128, (hwt // 128) * 128)
    hwt = min(hwt, HW)
    ns = pl.cdiv(HW, hwt)
    need_mask = (HW % hwt) != 0
    vmem_limit = int(max(bytes_per_lane * hwt + (2 << 20), 32 * 1024 * 1024))

    # Pass 1: per-(b, c) channel sums, accumulated over spatial tiles.
    sums = pl.pallas_call(
        functools.partial(_affm_sum_kernel, hw=HW, hwt=hwt, need_mask=need_mask),
        out_shape=jax.ShapeDtypeStruct((B, C, 1), jnp.float32),
        grid_spec=pltpu.PrefetchScalarGridSpec(
            num_scalar_prefetch=0,
            grid=(B, ns),
            in_specs=[
                pl.BlockSpec((1, C, hwt), lambda b, s: (b, 0, s)),
                pl.BlockSpec((1, C, hwt), lambda b, s: (b, 0, s)),
                pl.BlockSpec((1, C, hwt), lambda b, s: (b, 0, s)),
            ],
            out_specs=pl.BlockSpec((1, C, 1), lambda b, s: (b, 0, 0)),
        ),
        compiler_params=pltpu.CompilerParams(
            dimension_semantics=("parallel", "arbitrary"),
            vmem_limit_bytes=vmem_limit,
        ),
    )(f3, fe3, fd3)

    # Tiny gate + softmax on [B, C] pooled features (negligible vs HBM traffic).
    # TODO(synk): fold this into the last spatial step of pass 1 if the extra
    # intermediate op ever shows up in a trace.
    S = sums[:, :, 0] * (1.0 / HW)                                   # [B, C]
    z_pre = jnp.dot(S, w1t)                                          # [B, d]
    z = z_pre[:, :d2] * z_pre[:, d2:]                                # [B, d2]
    logits = jnp.einsum('bk,ick->bci', z, wf.astype(jnp.float32))    # [B, C, 3]
    att = jax.nn.softmax(logits, axis=1)                             # [B, C, 3] f32

    # Pass 2: apply the attention over spatial tiles.
    out3 = pl.pallas_call(
        _affm_apply_kernel,
        out_shape=jax.ShapeDtypeStruct((B, C, HW), io_dt),
        grid_spec=pltpu.PrefetchScalarGridSpec(
            num_scalar_prefetch=0,
            grid=(B, ns),
            in_specs=[
                pl.BlockSpec((1, C, 3), lambda b, s: (b, 0, 0)),
                pl.BlockSpec((1, C, hwt), lambda b, s: (b, 0, s)),
                pl.BlockSpec((1, C, hwt), lambda b, s: (b, 0, s)),
                pl.BlockSpec((1, C, hwt), lambda b, s: (b, 0, s)),
            ],
            out_specs=pl.BlockSpec((1, C, hwt), lambda b, s: (b, 0, s)),
        ),
        compiler_params=pltpu.CompilerParams(
            dimension_semantics=("parallel", "parallel"),
            vmem_limit_bytes=vmem_limit,
        ),
    )(att, f3, fe3, fd3)
    return out3.reshape(B, C, H, W)


def affm_reference(f, fe, fd, w1, wf):
    """Plain-JAX replica of the PyTorch forward (for verification)."""
    f = f.astype(jnp.float32)
    fe = fe.astype(jnp.float32)
    fd = fd.astype(jnp.float32)
    U = f + fe + fd
    S = jnp.mean(U, axis=(2, 3), keepdims=True)                  # [B, C, 1, 1]
    z_pre = jnp.einsum('dc,bcij->bdij', w1, S)                   # [B, d, 1, 1]
    d2 = w1.shape[0] // 2
    z = z_pre[:, :d2] * z_pre[:, d2:]                            # SimpleGate
    atts = []
    for i in range(3):
        logits = jnp.einsum('cd,bdij->bcij', wf[i], z)           # [B, C, 1, 1]
        atts.append(jax.nn.softmax(logits, axis=1))
    return atts[0] * f + atts[1] * fe + atts[2] * fd


if __name__ == "__main__":
    # Module config: in_channels=32, height=3, reduction=8, bias=False.
    B, C, H, W = 2, 32, 16, 16
    reduction = 8
    d = max(C // reduction, 4)       # = 4
    d2 = d // 2                      # = 2

    key = jax.random.PRNGKey(0)
    kf, kfe, kfd, kw1, kwf = jax.random.split(key, 5)
    f = jax.random.normal(kf, (B, C, H, W), dtype=jnp.float32)
    fe = jax.random.normal(kfe, (B, C, H, W), dtype=jnp.float32)
    fd = jax.random.normal(kfd, (B, C, H, W), dtype=jnp.float32)
    # conv_du weight [d, C, 1, 1] -> [d, C]; fcs weights stacked as [3, C, d2].
    w1 = jax.random.normal(kw1, (d, C), dtype=jnp.float32)
    wf = jax.random.normal(kwf, (3, C, d2), dtype=jnp.float32)

    ref = affm_reference(f, fe, fd, w1, wf)

    # 1) fused single-pass path, f32 I/O.
    out = affm_pallas(f, fe, fd, w1, wf)
    jax.block_until_ready(out)
    assert out.shape == (B, C, H, W)
    assert jnp.allclose(out, ref, atol=2e-3, rtol=2e-3), "f32 fused mismatch"

    # 2) fused path with a ragged last batch block (cdiv grid, B=3, bblk=2).
    f3b = jnp.concatenate([f, f[:1]], axis=0)
    fe3b = jnp.concatenate([fe, fe[:1]], axis=0)
    fd3b = jnp.concatenate([fd, fd[:1]], axis=0)
    out_rb = affm_pallas(f3b, fe3b, fd3b, w1, wf, batch_block=2)
    jax.block_until_ready(out_rb)
    ref_rb = affm_reference(f3b, fe3b, fd3b, w1, wf)
    assert jnp.allclose(out_rb, ref_rb, atol=2e-3, rtol=2e-3), "ragged-batch mismatch"

    # 3) bf16 I/O path (bf16 arriving from upstream; the wrapper never casts).
    fb, feb, fdb = (x.astype(jnp.bfloat16) for x in (f, fe, fd))
    out_bf = affm_pallas(fb, feb, fdb, w1, wf)
    jax.block_until_ready(out_bf)
    ref_bf = affm_reference(fb, feb, fdb, w1, wf)
    assert out_bf.dtype == jnp.bfloat16
    assert jnp.allclose(out_bf.astype(jnp.float32), ref_bf, atol=4e-2, rtol=4e-2), \
        "bf16 fused mismatch"

    # 4) spatially-tiled two-pass path (forced via a tiny VMEM budget), with a
    #    ragged last spatial tile (H*W = 400 is not a multiple of 128).
    Ht, Wt = 20, 20
    kt0, kt1, kt2 = jax.random.split(jax.random.PRNGKey(1), 3)
    ft = jax.random.normal(kt0, (B, C, Ht, Wt), dtype=jnp.float32)
    fet = jax.random.normal(kt1, (B, C, Ht, Wt), dtype=jnp.float32)
    fdt = jax.random.normal(kt2, (B, C, Ht, Wt), dtype=jnp.float32)
    out_t = affm_pallas(ft, fet, fdt, w1, wf, vmem_budget_bytes=128 * 1024)
    jax.block_until_ready(out_t)
    ref_t = affm_reference(ft, fet, fdt, w1, wf)
    assert jnp.allclose(out_t, ref_t, atol=2e-3, rtol=2e-3), "tiled-path mismatch"

    print("KERNEL_OK")
</pallas_src>

<mosaic_0001>
module attributes {stable_mosaic.version = 11 : i64} {
  func.func @_affm_fused_kernel(%arg0: i32, %arg1: memref<1x32x256xf32, #tpu.memory_space<vmem>>, %arg2: memref<1x32x256xf32, #tpu.memory_space<vmem>>, %arg3: memref<1x32x256xf32, #tpu.memory_space<vmem>>, %arg4: memref<32x10xf32, #tpu.memory_space<vmem>>, %arg5: memref<1x32x256xf32, #tpu.memory_space<vmem>>) attributes {dimension_semantics = [#tpu.dimension_semantics<parallel>], iteration_bounds = array<i64: 2>, scalar_prefetch = 0 : i64, scratch_operands = 0 : i64, tpu.core_type = #tpu.core_type<tc>, window_params = [{transform_indices = @transform_0, window_bounds = array<i64: 1, 32, 256>}, {transform_indices = @transform_1, window_bounds = array<i64: 1, 32, 256>}, {transform_indices = @transform_2, window_bounds = array<i64: 1, 32, 256>}, {pipeline_mode = #tpu.pipeline_mode<synchronous>, transform_indices = @transform_3, window_bounds = array<i64: 32, 10>}, {transform_indices = @transform_4, window_bounds = array<i64: 1, 32, 256>}]} {
    %c0 = arith.constant 0 : index
    %c0_0 = arith.constant 0 : index
    %c0_1 = arith.constant 0 : index
    %0 = vector.load %arg1[%c0, %c0_0, %c0_1] : memref<1x32x256xf32, #tpu.memory_space<vmem>>, vector<1x32x256xf32>
    %cst = arith.constant dense<0.000000e+00> : vector<1x32xf32>
    %1 = vector.multi_reduction <add>, %0, %cst [2] : vector<1x32x256xf32> to vector<1x32xf32>
    %2 = vector.shape_cast %1 : vector<1x32xf32> to vector<1x32x1xf32>
    %c0_2 = arith.constant 0 : index
    %c0_3 = arith.constant 0 : index
    %c0_4 = arith.constant 0 : index
    %3 = vector.load %arg2[%c0_2, %c0_3, %c0_4] : memref<1x32x256xf32, #tpu.memory_space<vmem>>, vector<1x32x256xf32>
    %cst_5 = arith.constant dense<0.000000e+00> : vector<1x32xf32>
    %4 = vector.multi_reduction <add>, %3, %cst_5 [2] : vector<1x32x256xf32> to vector<1x32xf32>
    %5 = vector.shape_cast %4 : vector<1x32xf32> to vector<1x32x1xf32>
    %6 = arith.addf %2, %5 : vector<1x32x1xf32>
    %c0_6 = arith.constant 0 : index
    %c0_7 = arith.constant 0 : index
    %c0_8 = arith.constant 0 : index
    %7 = vector.load %arg3[%c0_6, %c0_7, %c0_8] : memref<1x32x256xf32, #tpu.memory_space<vmem>>, vector<1x32x256xf32>
    %cst_9 = arith.constant dense<0.000000e+00> : vector<1x32xf32>
    %8 = vector.multi_reduction <add>, %7, %cst_9 [2] : vector<1x32x256xf32> to vector<1x32xf32>
    %9 = vector.shape_cast %8 : vector<1x32xf32> to vector<1x32x1xf32>
    %10 = arith.addf %6, %9 : vector<1x32x1xf32>
    %cst_10 = arith.constant 3.906250e-03 : f32
    %11 = vector.broadcast %cst_10 : f32 to vector<1x32x1xf32>
    %12 = arith.mulf %10, %11 : vector<1x32x1xf32>
    %c0_11 = arith.constant 0 : index
    %c0_12 = arith.constant 0 : index
    %13 = vector.load %arg4[%c0_11, %c0_12] : memref<32x10xf32, #tpu.memory_space<vmem>>, vector<32x10xf32>
    %14 = vector.extract_strided_slice %13 {offsets = [0, 0], sizes = [32, 4], strides = [1, 1]} : vector<32x10xf32> to vector<32x4xf32>
    %15 = vector.shape_cast %14 : vector<32x4xf32> to vector<1x32x4xf32>
    %16 = vector.broadcast %12 : vector<1x32x1xf32> to vector<1x32x4xf32>
    %17 = arith.mulf %16, %15 : vector<1x32x4xf32>
    %cst_13 = arith.constant dense<0.000000e+00> : vector<1x4xf32>
    %18 = vector.multi_reduction <add>, %17, %cst_13 [1] : vector<1x32x4xf32> to vector<1x4xf32>
    %19 = vector.shape_cast %18 : vector<1x4xf32> to vector<1x1x4xf32>
    %20 = vector.extract_strided_slice %19 {offsets = [0, 0, 0], sizes = [1, 1, 2], strides = [1, 1, 1]} : vector<1x1x4xf32> to vector<1x1x2xf32>
    %21 = vector.extract_strided_slice %19 {offsets = [0, 0, 2], sizes = [1, 1, 2], strides = [1, 1, 1]} : vector<1x1x4xf32> to vector<1x1x2xf32>
    %22 = arith.mulf %20, %21 : vector<1x1x2xf32>
    %23 = vector.extract_strided_slice %13 {offsets = [0, 4], sizes = [32, 2], strides = [1, 1]} : vector<32x10xf32> to vector<32x2xf32>
    %24 = vector.shape_cast %23 : vector<32x2xf32> to vector<1x32x2xf32>
    %25 = vector.broadcast %22 : vector<1x1x2xf32> to vector<1x32x2xf32>
    %26 = arith.mulf %25, %24 : vector<1x32x2xf32>
    %cst_14 = arith.constant dense<0.000000e+00> : vector<1x32xf32>
    %27 = vector.multi_reduction <add>, %26, %cst_14 [2] : vector<1x32x2xf32> to vector<1x32xf32>
    %28 = vector.shape_cast %27 : vector<1x32xf32> to vector<1x32x1xf32>
    %29 = vector.extract_strided_slice %13 {offsets = [0, 6], sizes = [32, 2], strides = [1, 1]} : vector<32x10xf32> to vector<32x2xf32>
    %30 = vector.shape_cast %29 : vector<32x2xf32> to vector<1x32x2xf32>
    %31 = vector.broadcast %22 : vector<1x1x2xf32> to vector<1x32x2xf32>
    %32 = arith.mulf %31, %30 : vector<1x32x2xf32>
    %cst_15 = arith.constant dense<0.000000e+00> : vector<1x32xf32>
    %33 = vector.multi_reduction <add>, %32, %cst_15 [2] : vector<1x32x2xf32> to vector<1x32xf32>
    %34 = vector.shape_cast %33 : vector<1x32xf32> to vector<1x32x1xf32>
    %35 = vector.extract_strided_slice %13 {offsets = [0, 8], sizes = [32, 2], strides = [1, 1]} : vector<32x10xf32> to vector<32x2xf32>
    %36 = vector.shape_cast %35 : vector<32x2xf32> to vector<1x32x2xf32>
    %37 = vector.broadcast %22 : vector<1x1x2xf32> to vector<1x32x2xf32>
    %38 = arith.mulf %37, %36 : vector<1x32x2xf32>
    %cst_16 = arith.constant dense<0.000000e+00> : vector<1x32xf32>
    %39 = vector.multi_reduction <add>, %38, %cst_16 [2] : vector<1x32x2xf32> to vector<1x32xf32>
    %40 = vector.shape_cast %39 : vector<1x32xf32> to vector<1x32x1xf32>
    %41 = tpu.concatenate %28, %34, %40 in 2 : vector<1x32x1xf32>, vector<1x32x1xf32>, vector<1x32x1xf32> -> vector<1x32x3xf32>
    %cst_17 = arith.constant dense<0xFF800000> : vector<1x3xf32>
    %42 = vector.multi_reduction <maximumf>, %41, %cst_17 [1] : vector<1x32x3xf32> to vector<1x3xf32>
    %43 = vector.shape_cast %42 : vector<1x3xf32> to vector<1x1x3xf32>
    %44 = vector.broadcast %43 : vector<1x1x3xf32> to vector<1x32x3xf32>
    %45 = arith.subf %41, %44 : vector<1x32x3xf32>
    %46 = math.exp %45 : vector<1x32x3xf32>
    %cst_18 = arith.constant dense<0.000000e+00> : vector<1x3xf32>
    %47 = vector.multi_reduction <add>, %46, %cst_18 [1] : vector<1x32x3xf32> to vector<1x3xf32>
    %48 = vector.shape_cast %47 : vector<1x3xf32> to vector<1x1x3xf32>
    %49 = vector.broadcast %48 : vector<1x1x3xf32> to vector<1x32x3xf32>
    %50 = arith.divf %46, %49 : vector<1x32x3xf32>
    %51 = vector.extract_strided_slice %50 {offsets = [0, 0, 0], sizes = [1, 32, 1], strides = [1, 1, 1]} : vector<1x32x3xf32> to vector<1x32x1xf32>
    %c0_19 = arith.constant 0 : index
    %c0_20 = arith.constant 0 : index
    %c0_21 = arith.constant 0 : index
    %52 = vector.load %arg1[%c0_19, %c0_20, %c0_21] : memref<1x32x256xf32, #tpu.memory_space<vmem>>, vector<1x32x256xf32>
    %53 = vector.broadcast %51 : vector<1x32x1xf32> to vector<1x32x256xf32>
    %54 = arith.mulf %53, %52 : vector<1x32x256xf32>
    %55 = vector.extract_strided_slice %50 {offsets = [0, 0, 1], sizes = [1, 32, 1], strides = [1, 1, 1]} : vector<1x32x3xf32> to vector<1x32x1xf32>
    %c0_22 = arith.constant 0 : index
    %c0_23 = arith.constant 0 : index
    %c0_24 = arith.constant 0 : index
    %56 = vector.load %arg2[%c0_22, %c0_23, %c0_24] : memref<1x32x256xf32, #tpu.memory_space<vmem>>, vector<1x32x256xf32>
    %57 = vector.broadcast %55 : vector<1x32x1xf32> to vector<1x32x256xf32>
    %58 = arith.mulf %57, %56 : vector<1x32x256xf32>
    %59 = arith.addf %54, %58 : vector<1x32x256xf32>
    %60 = vector.extract_strided_slice %50 {offsets = [0, 0, 2], sizes = [1, 32, 1], strides = [1, 1, 1]} : vector<1x32x3xf32> to vector<1x32x1xf32>
    %c0_25 = arith.constant 0 : index
    %c0_26 = arith.constant 0 : index
    %c0_27 = arith.constant 0 : index
    %61 = vector.load %arg3[%c0_25, %c0_26, %c0_27] : memref<1x32x256xf32, #tpu.memory_space<vmem>>, vector<1x32x256xf32>
    %62 = vector.broadcast %60 : vector<1x32x1xf32> to vector<1x32x256xf32>
    %63 = arith.mulf %62, %61 : vector<1x32x256xf32>
    %64 = arith.addf %59, %63 : vector<1x32x256xf32>
    %c0_28 = arith.constant 0 : index
    %c0_29 = arith.constant 0 : index
    %c0_30 = arith.constant 0 : index
    %65 = vector.load %arg5[%c0_28, %c0_29, %c0_30] : memref<1x32x256xf32, #tpu.memory_space<vmem>>, vector<1x32x256xf32>
    tpu.vector_store %arg5[%c0_28, %c0_29, %c0_30], %64 {strides = array<i32>} : memref<1x32x256xf32, #tpu.memory_space<vmem>>, vector<1x32x256xf32>,
    return
  }
  func.func @transform_0(%arg0: i32) -> (i32, i32, i32) {
    %c0_i32 = arith.constant 0 : i32
    %c0_i32_0 = arith.constant 0 : i32
    %c0_i32_1 = arith.constant 0 : i32
    return %arg0, %c0_i32, %c0_i32_0 : i32, i32, i32
  }
  func.func @transform_1(%arg0: i32) -> (i32, i32, i32) {
    %c0_i32 = arith.constant 0 : i32
    %c0_i32_0 = arith.constant 0 : i32
    %c0_i32_1 = arith.constant 0 : i32
    return %arg0, %c0_i32, %c0_i32_0 : i32, i32, i32
  }
  func.func @transform_2(%arg0: i32) -> (i32, i32, i32) {
    %c0_i32 = arith.constant 0 : i32
    %c0_i32_0 = arith.constant 0 : i32
    %c0_i32_1 = arith.constant 0 : i32
    return %arg0, %c0_i32, %c0_i32_0 : i32, i32, i32
  }
  func.func @transform_3(%arg0: i32) -> (i32, i32) {
    %c0_i32 = arith.constant 0 : i32
    %c0_i32_0 = arith.constant 0 : i32
    %c0_i32_1 = arith.constant 0 : i32
    return %c0_i32, %c0_i32_0 : i32, i32
  }
  func.func @transform_4(%arg0: i32) -> (i32, i32, i32) {
    %c0_i32 = arith.constant 0 : i32
    %c0_i32_0 = arith.constant 0 : i32
    %c0_i32_1 = arith.constant 0 : i32
    return %arg0, %c0_i32, %c0_i32_0 : i32, i32, i32
  }
}

</mosaic_0001>

<llo_original>
// kernel: tpu_custom_call.1
$region0: #{tpu_custom_call.1}
  #allocation0 [shape = 'u32[]', space=smem, size = 0x4, offset = 0x4, fixed_abs, tag = 'smem constant byte address 0x4 - core index']
  #allocation1 [shape = 'u32[144,128]{1,0:T(1,128)}', space=vmem, size = 0x12000, scoped, tag = 'internal scratch']
  %s0 = inlined_call_operand.hbm [shape: f32[2,32,256], index: 0, kind: input, shape index: {}]
  %s1 = inlined_call_operand.hbm [shape: f32[2,32,256], index: 1, kind: input, shape index: {}]
  %s2 = inlined_call_operand.hbm [shape: f32[2,32,256], index: 2, kind: input, shape index: {}]
  %s3 = inlined_call_operand.vmem [shape: f32[32,10], index: 3, kind: input, shape index: {}]
  %s4 = inlined_call_operand.hbm [shape: f32[2,32,256], index: 4, kind: output, shape index: {}]
  %s5 = sld [smem:[#allocation0]]
  $region61: #{tpu_custom_call.1} parent=0
    _
  %s7 = ssub.s32 1, %s5
  %s8 = scalar_select 0, %s7, %s5
  $region1: #{tpu_custom_call.1} parent=0
    #allocation2 [shape = 'u8[65536]{0}', space=vmem, size = 0x10000, scoped, tag = 'input window, operand 0']
    #allocation3 [shape = 's32[2]{0}', space=sflag, size = 0x8, scoped, tag = 'scoped memory for tpu_custom_call.1']
    #allocation4 [shape = 's32[2]{0}', space=sflag, size = 0x8, scoped, tag = 'scoped memory for tpu_custom_call.1']
    #allocation5 [shape = 'u8[65536]{0}', space=vmem, size = 0x10000, scoped, tag = 'input window, operand 1']
    #allocation6 [shape = 's32[2]{0}', space=sflag, size = 0x8, scoped, tag = 'scoped memory for tpu_custom_call.1']
    #allocation7 [shape = 'u8[65536]{0}', space=vmem, size = 0x10000, scoped, tag = 'input window, operand 2']
    #allocation8 [shape = 'u8[65536]{0}', space=vmem, size = 0x10000, scoped, tag = 'output window, operand 0']
    %9 = vsyncpa [#allocation3], 0
    %s10 = scalar_lea.sflag [#allocation3], 1
    %11 = vsyncpa %s10, 0
    %12 = vsyncpa [#allocation6], 0
    %s13 = scalar_lea.sflag [#allocation6], 1
    %14 = vsyncpa %s13, 0
    %15 = vsyncpa [#allocation4], 0
    %s16 = scalar_lea.sflag [#allocation4], 1
    %17 = vsyncpa %s16, 0
    loop: start=0, step=1, limit=4
    $region2: #{tpu_custom_call.1} parent=1 // loop_pre_header
      _
    $region3: #{tpu_custom_call.1} parent=1 // loop_header
      %s19 = sphi 0, %s23
      %p20 = scmp.ge.s32.totalorder %s19, 4
      %s29 = sphi 0, %s31
      %s32 = sphi 0, %s29
      %s33 = sphi 0, %s32
      %s49 = sphi 0, %s33
      %s55 = sphi 0, %s57
      %s58 = sphi 0, %s55
      %s59 = sphi 0, %s58
      %s75 = sphi 0, %s59
      %s81 = sphi 0, %s83
      %s84 = sphi 0, %s81
      %s85 = sphi 0, %s84
      %s101 = sphi 0, %s85
      %s105 = sphi 0, %s105
      %s107 = sphi 0, %s105
      %s108 = sphi 0, %s107
      %s122 = sphi 0, %s108
      %s128 = sphi 0, %s130
      %s131 = sphi 0, %s128
      %s132 = sphi 0, %s131
      %s148 = sphi 0, %s132
    $region4: #{tpu_custom_call.1} parent=1 // loop_header_branch
      %22 = sbr.rel (%p20) target = $region8
    $region5: #{tpu_custom_call.1} parent=1 // loop_body
      %s24 = ssub.s32 %s19, 1
      %s25 = ssub.s32 %s19, 2
      %s26 = sadd.s32 %s19, 1
      %s27 = ssub.s32 %s19, %s26
      %p28 = scmp.eq.s32.totalorder %s27, 0
      %s30 = sadd.s32 %s29, 1
      %s31 = scalar_select %p28, %s29, %s30
      %p34 = pneg %p28
      %p35 = scmp.eq.s32.totalorder %s19, 1
      %p36 = por %p34, %p35
      %p37 = scmp.ne.s32.totalorder %s29, %s32
      %p38 = scmp.eq.s32.totalorder %s19, 0
      %p39 = por %p37, %p38
      %p40 = scmp.ne.s32.totalorder %s29, %s32
      %p41 = scmp.eq.s32.totalorder %s24, 1
      %p42 = por %p40, %p41
      %p43 = scmp.ne.s32.totalorder %s32, %s33
      %p44 = scmp.eq.s32.totalorder %s24, 0
      %p45 = por %p43, %p44
      %p46 = scmp.ne.s32.totalorder %s32, %s33
      %p47 = scmp.eq.s32.totalorder %s25, 1
      %p48 = por %p46, %p47
      %p50 = scmp.ne.s32.totalorder %s33, %s49
      %p51 = scmp.eq.s32.totalorder %s25, 0
      %p52 = por %p50, %p51
      %s53 = ssub.s32 %s19, %s26
      %p54 = scmp.eq.s32.totalorder %s53, 0
      %s56 = sadd.s32 %s55, 1
      %s57 = scalar_select %p54, %s55, %s56
      %p60 = pneg %p54
      %p61 = scmp.eq.s32.totalorder %s19, 1
      %p62 = por %p60, %p61
      %p63 = scmp.ne.s32.totalorder %s55, %s58
      %p64 = scmp.eq.s32.totalorder %s19, 0
      %p65 = por %p63, %p64
      %p66 = scmp.ne.s32.totalorder %s55, %s58
      %p67 = scmp.eq.s32.totalorder %s24, 1
      %p68 = por %p66, %p67
      %p69 = scmp.ne.s32.totalorder %s58, %s59
      %p70 = scmp.eq.s32.totalorder %s24, 0
      %p71 = por %p69, %p70
      %p72 = scmp.ne.s32.totalorder %s58, %s59
      %p73 = scmp.eq.s32.totalorder %s25, 1
      %p74 = por %p72, %p73
      %p76 = scmp.ne.s32.totalorder %s59, %s75
      %p77 = scmp.eq.s32.totalorder %s25, 0
      %p78 = por %p76, %p77
      %s79 = ssub.s32 %s19, %s26
      %p80 = scmp.eq.s32.totalorder %s79, 0
      %s82 = sadd.s32 %s81, 1
      %s83 = scalar_select %p80, %s81, %s82
      %p86 = pneg %p80
      %p87 = scmp.eq.s32.totalorder %s19, 1
      %p88 = por %p86, %p87
      %p89 = scmp.ne.s32.totalorder %s81, %s84
      %p90 = scmp.eq.s32.totalorder %s19, 0
      %p91 = por %p89, %p90
      %p92 = scmp.ne.s32.totalorder %s81, %s84
      %p93 = scmp.eq.s32.totalorder %s24, 1
      %p94 = por %p92, %p93
      %p95 = scmp.ne.s32.totalorder %s84, %s85
      %p96 = scmp.eq.s32.totalorder %s24, 0
      %p97 = por %p95, %p96
      %p98 = scmp.ne.s32.totalorder %s84, %s85
      %p99 = scmp.eq.s32.totalorder %s25, 1
      %p100 = por %p98, %p99
      %p102 = scmp.ne.s32.totalorder %s85, %s101
      %p103 = scmp.eq.s32.totalorder %s25, 0
      %p104 = por %p102, %p103
      %s106 = sadd.s32 %s105, 1
      %p109 = scmp.eq.s32.totalorder %s19, 1
      %p110 = scmp.ne.s32.totalorder %s105, %s107
      %p111 = scmp.eq.s32.totalorder %s19, 0
      %p112 = por %p110, %p111
      %p113 = scmp.ne.s32.totalorder %s105, %s107
      %p114 = scmp.eq.s32.totalorder %s24, 1
      %p115 = por %p113, %p114
      %p116 = scmp.ne.s32.totalorder %s107, %s108
      %p117 = scmp.eq.s32.totalorder %s24, 0
      %p118 = por %p116, %p117
      %p119 = scmp.ne.s32.totalorder %s107, %s108
      %p120 = scmp.eq.s32.totalorder %s25, 1
      %p121 = por %p119, %p120
      %p123 = scmp.ne.s32.totalorder %s108, %s122
      %p124 = scmp.eq.s32.totalorder %s25, 0
      %p125 = por %p123, %p124
      %s126 = ssub.s32 %s19, %s26
      %p127 = scmp.eq.s32.totalorder %s126, 0
      %s129 = sadd.s32 %s128, 1
      %s130 = scalar_select %p127, %s128, %s129
      %p133 = pneg %p127
      %p134 = scmp.eq.s32.totalorder %s19, 1
      %p135 = por %p133, %p134
      %p136 = scmp.ne.s32.totalorder %s128, %s131
      %p137 = scmp.eq.s32.totalorder %s19, 0
      %p138 = por %p136, %p137
      %p139 = scmp.ne.s32.totalorder %s128, %s131
      %p140 = scmp.eq.s32.totalorder %s24, 1
      %p141 = por %p139, %p140
      %p142 = scmp.ne.s32.totalorder %s131, %s132
      %p143 = scmp.eq.s32.totalorder %s24, 0
      %p144 = por %p142, %p143
      %p145 = scmp.ne.s32.totalorder %s131, %s132
      %p146 = scmp.eq.s32.totalorder %s25, 1
      %p147 = por %p145, %p146
      %p149 = scmp.ne.s32.totalorder %s132, %s148
      %p150 = scmp.eq.s32.totalorder %s25, 0
      %p151 = por %p149, %p150
      %p152 = scmp.le.s32.totalorder 1, %s19
      %p153 = scmp.lt.s32.totalorder %s19, 3
      %p154 = pnand %p152, %p153
      %p155 = pneg %p154
      // Predicated region
      $region9: #{tpu_custom_call.1} parent=5 // pred_check
        _
      $region10: #{tpu_custom_call.1} parent=5 // pred_check_branch
        %157 = sbr.rel (%p154) target = $region12
      $region11: #{tpu_custom_call.1} parent=5 // pred_region
        %s158 = ssub.s32 %s19, 1
        // Predicated region
        $region13: #{tpu_custom_call.1} parent=11 // pred_check
          %p159 = pneg %p118
        $region14: #{tpu_custom_call.1} parent=11 // pred_check_branch
          %161 = sbr.rel (%p159) target = $region16
        $region15: #{tpu_custom_call.1} parent=11 // pred_region
          _
        $region16: #{tpu_custom_call.1} parent=11 // pred_fallthru
          _
      $region12: #{tpu_custom_call.1} parent=5 // pred_fallthru
        _
      %p162 = scmp.lt.s32.totalorder %s19, 2
      // Predicated region
      $region17: #{tpu_custom_call.1} parent=5 // pred_check
        %p163 = pneg %p162
      $region18: #{tpu_custom_call.1} parent=5 // pred_check_branch
        %165 = sbr.rel (%p163) target = $region20
      $region19: #{tpu_custom_call.1} parent=5 // pred_region
        // Predicated region
        $region21: #{tpu_custom_call.1} parent=19 // pred_check
          %p166 = pneg %p39
        $region22: #{tpu_custom_call.1} parent=19 // pred_check_branch
          %168 = sbr.rel (%p166) target = $region24
        $region23: #{tpu_custom_call.1} parent=19 // pred_region
          %s169 = sand.u32 %s29, 1
          %s170 = scalar_lea.sflag [#allocation3], %s169
          %s171 = sand.u32 %s29, 1
          %s172 = smul.addr %s171, 64
          %s173 = scalar_lea.vmem [#allocation2], %s172
          %s175 = ssub.s32 1024, 1024
          %176 = vsyncadd %s170, %s175
          %s177 = smul.addr %s19, 8
          %s178 = smul.addr %s177, 128
          %s179 = scalar_lea.hbm %s0, %s178
          %s180 = sshll.u32 %s173, 4
          %s181 = int_to_ptr.vmem [resolvable:$true] %s180
          %186 = dma.hbm_to_vmem [thread:$0]  %s179, 1024, %s181, %s170, 256, 256, 16
        $region24: #{tpu_custom_call.1} parent=19 // pred_fallthru
          _
        // Predicated region
        $region25: #{tpu_custom_call.1} parent=19 // pred_check
          %p187 = pneg %p65
        $region26: #{tpu_custom_call.1} parent=19 // pred_check_branch
          %189 = sbr.rel (%p187) target = $region28
        $region27: #{tpu_custom_call.1} parent=19 // pred_region
          %s190 = sand.u32 %s19, 1
          %s191 = scalar_lea.sflag [#allocation6], %s190
          %s192 = sand.u32 %s55, 1
          %s193 = smul.addr %s192, 64
          %s194 = scalar_lea.vmem [#allocation5], %s193
          %s196 = ssub.s32 1024, 1024
          %197 = vsyncadd %s191, %s196
          %s198 = smul.addr %s19, 8
          %s199 = smul.addr %s198, 128
          %s200 = scalar_lea.hbm %s1, %s199
          %s201 = sshll.u32 %s194, 4
          %s202 = int_to_ptr.vmem [resolvable:$true] %s201
          %207 = dma.hbm_to_vmem [thread:$0]  %s200, 1024, %s202, %s191, 256, 256, 16
        $region28: #{tpu_custom_call.1} parent=19 // pred_fallthru
          _
        // Predicated region
        $region29: #{tpu_custom_call.1} parent=19 // pred_check
          %p208 = pneg %p91
        $region30: #{tpu_custom_call.1} parent=19 // pred_check_branch
          %210 = sbr.rel (%p208) target = $region32
        $region31: #{tpu_custom_call.1} parent=19 // pred_region
          %s211 = sand.u32 %s19, 1
          %s212 = scalar_lea.sflag [#allocation6], %s211
          %s213 = sand.u32 %s81, 1
          %s214 = smul.addr %s213, 64
          %s215 = scalar_lea.vmem [#allocation7], %s214
          %s217 = ssub.s32 1024, 1024
          %218 = vsyncadd %s212, %s217
          %s219 = smul.addr %s19, 8
          %s220 = smul.addr %s219, 128
          %s221 = scalar_lea.hbm %s2, %s220
          %s222 = sshll.u32 %s215, 4
          %s223 = int_to_ptr.vmem [resolvable:$true] %s222
          %228 = dma.hbm_to_vmem [thread:$0]  %s221, 1024, %s223, %s212, 256, 256, 16
        $region32: #{tpu_custom_call.1} parent=19 // pred_fallthru
          _
      $region20: #{tpu_custom_call.1} parent=5 // pred_fallthru
        _
      %p229 = scmp.le.s32.totalorder 1, %s19
      %p230 = scmp.lt.s32.totalorder %s19, 3
      %p231 = pnand %p229, %p230
      %p232 = pneg %p231
      // Predicated region
      $region33: #{tpu_custom_call.1} parent=5 // pred_check
        _
      $region34: #{tpu_custom_call.1} parent=5 // pred_check_branch
        %234 = sbr.rel (%p231) target = $region36
      $region35: #{tpu_custom_call.1} parent=5 // pred_region
        %s235 = ssub.s32 %s19, 1
        %s236 = sand.u32 %s32, 1
        %s237 = scalar_lea.sflag [#allocation3], %s236
        %s238 = sand.u32 %s32, 1
        %s239 = smul.addr %s238, 64
        %s240 = scalar_lea.vmem [#allocation2], %s239
        // Predicated region
        $region37: #{tpu_custom_call.1} parent=35 // pred_check
          %p241 = pneg %p45
        $region38: #{tpu_custom_call.1} parent=35 // pred_check_branch
          %243 = sbr.rel (%p241) target = $region40
        $region39: #{tpu_custom_call.1} parent=35 // pred_region
          %244 = dma.done %s237, 1024
        $region40: #{tpu_custom_call.1} parent=35 // pred_fallthru
          _
        %s245 = sand.u32 %s24, 1
        %s246 = scalar_lea.sflag [#allocation6], %s245
        %s247 = sand.u32 %s58, 1
        %s248 = smul.addr %s247, 64
        %s249 = scalar_lea.vmem [#allocation5], %s248
        // Predicated region
        $region41: #{tpu_custom_call.1} parent=35 // pred_check
          %p250 = pneg %p71
        $region42: #{tpu_custom_call.1} parent=35 // pred_check_branch
          %252 = sbr.rel (%p250) target = $region44
        $region43: #{tpu_custom_call.1} parent=35 // pred_region
          %253 = dma.done %s246, 1024
        $region44: #{tpu_custom_call.1} parent=35 // pred_fallthru
          _
        %s254 = sand.u32 %s24, 1
        %s255 = scalar_lea.sflag [#allocation6], %s254
        %s256 = sand.u32 %s84, 1
        %s257 = smul.addr %s256, 64
        %s258 = scalar_lea.vmem [#allocation7], %s257
        // Predicated region
        $region45: #{tpu_custom_call.1} parent=35 // pred_check
          %p259 = pneg %p97
        $region46: #{tpu_custom_call.1} parent=35 // pred_check_branch
          %261 = sbr.rel (%p259) target = $region48
        $region47: #{tpu_custom_call.1} parent=35 // pred_region
          %262 = dma.done %s255, 1024
        $region48: #{tpu_custom_call.1} parent=35 // pred_fallthru
          _
        %s263 = sand.u32 %s32, 1
        %s264 = scalar_lea.sflag [#allocation3], %s263
        %s265 = sand.u32 %s32, 1
        %s266 = smul.addr %s265, 64
        %s267 = scalar_lea.vmem [#allocation2], %s266
        %p268 = pneg %p45
        %p269 = pneg %p42
        %s270 = sand.u32 %s24, 1
        %s271 = scalar_lea.sflag [#allocation6], %s270
        %s272 = sand.u32 %s58, 1
        %s273 = smul.addr %s272, 64
        %s274 = scalar_lea.vmem [#allocation5], %s273
        %p275 = pneg %p71
        %p276 = pneg %p68
        %s277 = sand.u32 %s24, 1
        %s278 = scalar_lea.sflag [#allocation6], %s277
        %s279 = sand.u32 %s84, 1
        %s280 = smul.addr %s279, 64
        %s281 = scalar_lea.vmem [#allocation7], %s280
        %p282 = pneg %p97
        %p283 = pneg %p94
        %p284 = pneg %p118
        %p285 = pneg %p115
        %p286 = pneg %p144
        %p287 = pneg %p141
        %s288 = sand.u32 %s131, 1
        %s289 = scalar_lea.sflag [#allocation4], %s288
        %s290 = sand.u32 %s131, 1
        %s291 = smul.addr %s290, 64
        %s292 = scalar_lea.vmem [#allocation8], %s291
        %v293 = vld [vmem:[%s240] sm:$0xff]
        %v294 = vld [vmem:[%s240 + $0x8] sm:$0xff]
        %v295 = vld [vmem:[%s240 + $0x10] sm:$0xff]
        %v296 = vld [vmem:[%s240 + $0x18] sm:$0xff]
        %v297 = vld [vmem:[%s240 + $0x20] sm:$0xff]
        %v298 = vld [vmem:[%s240 + $0x28] sm:$0xff]
        %v299 = vld [vmem:[%s240 + $0x30] sm:$0xff]
        %v300 = vld [vmem:[%s240 + $0x38] sm:$0xff]
        %v301 = vadd.f32 %v293, %v294
        %302 = vadd.xlane.f32.xlu0 %v301
        %v303 = vpop.xlane.xlu0 %302
        %v304 = vadd.f32 %v295, %v296
        %305 = vadd.xlane.f32.xlu0 %v304
        %v306 = vpop.xlane.xlu0 %305
        %v307 = vadd.f32 %v297, %v298
        %308 = vadd.xlane.f32.xlu0 %v307
        %v309 = vpop.xlane.xlu0 %308
        %v310 = vadd.f32 %v299, %v300
        %311 = vadd.xlane.f32.xlu0 %v310
        %v312 = vpop.xlane.xlu0 %311
        %v313 = vld [vmem:[%s249] sm:$0xff]
        %v314 = vld [vmem:[%s249 + $0x8] sm:$0xff]
        %v315 = vld [vmem:[%s249 + $0x10] sm:$0xff]
        %v316 = vld [vmem:[%s249 + $0x18] sm:$0xff]
        %v317 = vld [vmem:[%s249 + $0x20] sm:$0xff]
        %v318 = vld [vmem:[%s249 + $0x28] sm:$0xff]
        %v319 = vld [vmem:[%s249 + $0x30] sm:$0xff]
        %v320 = vld [vmem:[%s249 + $0x38] sm:$0xff]
        %v321 = vadd.f32 %v313, %v314
        %322 = vadd.xlane.f32.xlu0 %v321
        %v323 = vpop.xlane.xlu0 %322
        %v324 = vadd.f32 %v315, %v316
        %325 = vadd.xlane.f32.xlu0 %v324
        %v326 = vpop.xlane.xlu0 %325
        %v327 = vadd.f32 %v317, %v318
        %328 = vadd.xlane.f32.xlu0 %v327
        %v329 = vpop.xlane.xlu0 %328
        %v330 = vadd.f32 %v319, %v320
        %331 = vadd.xlane.f32.xlu0 %v330
        %v332 = vpop.xlane.xlu0 %331
        %v333 = vadd.f32 %v303, %v323
        %v334 = vadd.f32 %v306, %v326
        %v335 = vadd.f32 %v309, %v329
        %v336 = vadd.f32 %v312, %v332
        %v337 = vld [vmem:[%s258] sm:$0xff]
        %v338 = vld [vmem:[%s258 + $0x8] sm:$0xff]
        %v339 = vld [vmem:[%s258 + $0x10] sm:$0xff]
        %v340 = vld [vmem:[%s258 + $0x18] sm:$0xff]
        %v341 = vld [vmem:[%s258 + $0x20] sm:$0xff]
        %v342 = vld [vmem:[%s258 + $0x28] sm:$0xff]
        %v343 = vld [vmem:[%s258 + $0x30] sm:$0xff]
        %v344 = vld [vmem:[%s258 + $0x38] sm:$0xff]
        %v345 = vadd.f32 %v337, %v338
        %346 = vadd.xlane.f32.xlu0 %v345
        %v347 = vpop.xlane.xlu0 %346
        %v348 = vadd.f32 %v339, %v340
        %349 = vadd.xlane.f32.xlu0 %v348
        %v350 = vpop.xlane.xlu0 %349
        %v351 = vadd.f32 %v341, %v342
        %352 = vadd.xlane.f32.xlu0 %v351
        %v353 = vpop.xlane.xlu0 %352
        %v354 = vadd.f32 %v343, %v344
        %355 = vadd.xlane.f32.xlu0 %v354
        %v356 = vpop.xlane.xlu0 %355
        %v357 = vadd.f32 %v333, %v347
        %v358 = vadd.f32 %v334, %v350
        %v359 = vadd.f32 %v335, %v353
        %v360 = vadd.f32 %v336, %v356
        %v361 = vmul.f32 %v357, 0.00390625
        %v362 = vmul.f32 %v358, 0.00390625
        %v363 = vmul.f32 %v359, 0.00390625
        %v364 = vmul.f32 %v360, 0.00390625
        %v365 = vld [vmem:[%s3] sm:$0xff]
        %v366 = vld [vmem:[%s3 + $0x8] sm:$0xff]
        %v367 = vld [vmem:[%s3 + $0x10] sm:$0xff]
        %v368 = vld [vmem:[%s3 + $0x18] sm:$0xff]
        %v369 = vmul.f32 %v361, %v365
        %v370 = vmul.f32 %v362, %v366
        %v371 = vmul.f32 %v363, %v367
        %v372 = vmul.f32 %v364, %v368
        %vm373 = vcmask 31744
        %v374 = vsel %vm373, %v369, 0.0
        %v375 = vsel %vm373, %v370, 0.0
        %v376 = vadd.f32 %v374, %v375
        %v377 = vsel %vm373, %v371, 0.0
        %v378 = vadd.f32 %v376, %v377
        %v379 = vsel %vm373, %v372, 0.0
        %v380 = vadd.f32 %v378, %v379
        %v381 = vrot.slane %v380, 4
        %v382 = vadd.f32 %v380, %v381
        %v383 = vrot.slane %v382, 2
        %v384 = vadd.f32 %v382, %v383
        %v385 = vrot.slane %v384, 1
        %v386 = vadd.f32 %v384, %v385
        %388 = vrot.lane.b32.xlu0 %v386, 126
        %v389 = vpop.permute.xlu0 %388
        %v391 = vmul.f32 %v386, %v389
        %v392 = vlaneseq
        %v393 = vshrl.u32 %v392, 7
        %v394 = vsub.s32 0, %v393
        %v395 = vrot.slane %v391, %v394
        %400 = vrot.lane.b32.xlu0 %v365, 124
        %v401 = vpop.permute.xlu0 %400
        %402 = vrot.lane.b32.xlu0 %v366, 124
        %v403 = vpop.permute.xlu0 %402
        %404 = vrot.lane.b32.xlu0 %v367, 124
        %v405 = vpop.permute.xlu0 %404
        %406 = vrot.lane.b32.xlu0 %v368, 124
        %v407 = vpop.permute.xlu0 %406
        %v412 = vmul.f32 %v395, %v401
        %v413 = vmul.f32 %v395, %v403
        %v414 = vmul.f32 %v395, %v405
        %v415 = vmul.f32 %v395, %v407
        %vm416 = vcmask 15360
        %v417 = vsel %vm416, %v412, 0.0
        %418 = vadd.xlane.f32.xlu0 %v417
        %v419 = vpop.xlane.xlu0 %418
        %v420 = vsel %vm416, %v413, 0.0
        %421 = vadd.xlane.f32.xlu0 %v420
        %v422 = vpop.xlane.xlu0 %421
        %v423 = vsel %vm416, %v414, 0.0
        %424 = vadd.xlane.f32.xlu0 %v423
        %v425 = vpop.xlane.xlu0 %424
        %v426 = vsel %vm416, %v415, 0.0
        %427 = vadd.xlane.f32.xlu0 %v426
        %v428 = vpop.xlane.xlu0 %427
        %429 = vrot.lane.b32.xlu0 %v365, 122
        %v430 = vpop.permute.xlu0 %429
        %431 = vrot.lane.b32.xlu0 %v366, 122
        %v432 = vpop.permute.xlu0 %431
        %433 = vrot.lane.b32.xlu0 %v367, 122
        %v434 = vpop.permute.xlu0 %433
        %435 = vrot.lane.b32.xlu0 %v368, 122
        %v436 = vpop.permute.xlu0 %435
        %v441 = vmul.f32 %v395, %v430
        %v442 = vmul.f32 %v395, %v432
        %v443 = vmul.f32 %v395, %v434
        %v444 = vmul.f32 %v395, %v436
        %v445 = vsel %vm416, %v441, 0.0
        %446 = vadd.xlane.f32.xlu0 %v445
        %v447 = vpop.xlane.xlu0 %446
        %v448 = vsel %vm416, %v442, 0.0
        %449 = vadd.xlane.f32.xlu0 %v448
        %v450 = vpop.xlane.xlu0 %449
        %v451 = vsel %vm416, %v443, 0.0
        %452 = vadd.xlane.f32.xlu0 %v451
        %v453 = vpop.xlane.xlu0 %452
        %v454 = vsel %vm416, %v444, 0.0
        %455 = vadd.xlane.f32.xlu0 %v454
        %v456 = vpop.xlane.xlu0 %455
        %457 = vrot.lane.b32.xlu0 %v365, 120
        %v458 = vpop.permute.xlu0 %457
        %459 = vrot.lane.b32.xlu0 %v366, 120
        %v460 = vpop.permute.xlu0 %459
        %461 = vrot.lane.b32.xlu0 %v367, 120
        %v462 = vpop.permute.xlu0 %461
        %463 = vrot.lane.b32.xlu0 %v368, 120
        %v464 = vpop.permute.xlu0 %463
        %v469 = vmul.f32 %v395, %v458
        %v470 = vmul.f32 %v395, %v460
        %v471 = vmul.f32 %v395, %v462
        %v472 = vmul.f32 %v395, %v464
        %v473 = vsel %vm416, %v469, 0.0
        %474 = vadd.xlane.f32.xlu0 %v473
        %v475 = vpop.xlane.xlu0 %474
        %v476 = vsel %vm416, %v470, 0.0
        %477 = vadd.xlane.f32.xlu0 %v476
        %v478 = vpop.xlane.xlu0 %477
        %v479 = vsel %vm416, %v471, 0.0
        %480 = vadd.xlane.f32.xlu0 %v479
        %v481 = vpop.xlane.xlu0 %480
        %v482 = vsel %vm416, %v472, 0.0
        %483 = vadd.xlane.f32.xlu0 %v482
        %v484 = vpop.xlane.xlu0 %483
        %vm485 = vcmask 7168
        %v486 = vsel %vm485, %v419, %v447
        %v487 = vsel %vm485, %v422, %v450
        %v488 = vsel %vm485, %v425, %v453
        %v489 = vsel %vm485, %v428, %v456
        %v490 = vsel %vm416, %v486, %v475
        %v491 = vsel %vm416, %v487, %v478
        %v492 = vsel %vm416, %v488, %v481
        %v493 = vsel %vm416, %v489, %v484
        %vm494 = vcmask 23552
        %v495 = vsel %vm494, %v490, -inf
        %v496 = vsel %vm494, %v491, -inf
        %v497 = vsel %vm494, %v492, -inf
        %v498 = vsel %vm494, %v493, -inf
        %v499 = vmax.f32 %v495, %v496
        %v500 = vmax.f32 %v497, %v498
        %v501 = vmax.f32 %v499, %v500
        %v502 = vrot.slane %v501, 4
        %v503 = vmax.f32 %v501, %v502
        %v504 = vrot.slane %v503, 2
        %v505 = vmax.f32 %v503, %v504
        %v506 = vrot.slane %v505, 1
        %v507 = vmax.f32 %v505, %v506
        %v508 = vsub.f32 %v490, %v507
        %v509 = vsub.f32 %v491, %v507
        %v510 = vsub.f32 %v492, %v507
        %v511 = vsub.f32 %v493, %v507
        %v512 = vmul.f32 %v508, 1.442695
        %v513 = vpow.pop %v512
        %v514 = vmul.f32 %v509, 1.442695
        %v515 = vpow.pop %v514
        %v516 = vmul.f32 %v510, 1.442695
        %v517 = vpow.pop %v516
        %v518 = vmul.f32 %v511, 1.442695
        %v519 = vpow.pop %v518
        %v520 = vsel %vm494, %v513, 0.0
        %v521 = vsel %vm494, %v515, 0.0
        %v522 = vadd.f32 %v520, %v521
        %v523 = vsel %vm494, %v517, 0.0
        %v524 = vadd.f32 %v522, %v523
        %v525 = vsel %vm494, %v519, 0.0
        %v526 = vadd.f32 %v524, %v525
        %v527 = vrot.slane %v526, 4
        %v528 = vadd.f32 %v526, %v527
        %v529 = vrot.slane %v528, 2
        %v530 = vadd.f32 %v528, %v529
        %v531 = vrot.slane %v530, 1
        %v532 = vadd.f32 %v530, %v531
        %v533 = vrcp.pop %v532
        %v534 = vmul.f32 %v513, %v533
        %v535 = vmul.f32 %v515, %v533
        %v536 = vmul.f32 %v517, %v533
        %v537 = vmul.f32 %v519, %v533
        %539 = vset.pattern.permute.xlu0 0
        %540 = vperm.xlu0 %539, %v534
        %v541 = vpop.permute.xlu0 %540
        %544 = vset.pattern.permute.xlu0 0
        %545 = vperm.xlu0 %544, %v535
        %v546 = vpop.permute.xlu0 %545
        %549 = vset.pattern.permute.xlu0 0
        %550 = vperm.xlu0 %549, %v536
        %v551 = vpop.permute.xlu0 %550
        %554 = vset.pattern.permute.xlu0 0
        %555 = vperm.xlu0 %554, %v537
        %v556 = vpop.permute.xlu0 %555
        %v558 = vmul.f32 %v541, %v293
        %v559 = vmul.f32 %v541, %v294
        %v560 = vmul.f32 %v546, %v295
        %v561 = vmul.f32 %v546, %v296
        %v562 = vmul.f32 %v551, %v297
        %v563 = vmul.f32 %v551, %v298
        %v564 = vmul.f32 %v556, %v299
        %v565 = vmul.f32 %v556, %v300
        %566 = vset.pattern.permute.xlu0 1
        %567 = vperm.xlu0 %566, %v534
        %v568 = vpop.permute.xlu0 %567
        %570 = vset.pattern.permute.xlu0 1
        %571 = vperm.xlu0 %570, %v535
        %v572 = vpop.permute.xlu0 %571
        %574 = vset.pattern.permute.xlu0 1
        %575 = vperm.xlu0 %574, %v536
        %v576 = vpop.permute.xlu0 %575
        %578 = vset.pattern.permute.xlu0 1
        %579 = vperm.xlu0 %578, %v537
        %v580 = vpop.permute.xlu0 %579
        %v582 = vmul.f32 %v568, %v313
        %v583 = vmul.f32 %v568, %v314
        %v584 = vmul.f32 %v572, %v315
        %v585 = vmul.f32 %v572, %v316
        %v586 = vmul.f32 %v576, %v317
        %v587 = vmul.f32 %v576, %v318
        %v588 = vmul.f32 %v580, %v319
        %v589 = vmul.f32 %v580, %v320
        %v590 = vadd.f32 %v558, %v582
        %v591 = vadd.f32 %v559, %v583
        %v592 = vadd.f32 %v560, %v584
        %v593 = vadd.f32 %v561, %v585
        %v594 = vadd.f32 %v562, %v586
        %v595 = vadd.f32 %v563, %v587
        %v596 = vadd.f32 %v564, %v588
        %v597 = vadd.f32 %v565, %v589
        %598 = vset.pattern.permute.xlu0 2
        %599 = vperm.xlu0 %598, %v534
        %v600 = vpop.permute.xlu0 %599
        %602 = vset.pattern.permute.xlu0 2
        %603 = vperm.xlu0 %602, %v535
        %v604 = vpop.permute.xlu0 %603
        %606 = vset.pattern.permute.xlu0 2
        %607 = vperm.xlu0 %606, %v536
        %v608 = vpop.permute.xlu0 %607
        %610 = vset.pattern.permute.xlu0 2
        %611 = vperm.xlu0 %610, %v537
        %v612 = vpop.permute.xlu0 %611
        %v614 = vmul.f32 %v600, %v337
        %v615 = vmul.f32 %v600, %v338
        %v616 = vmul.f32 %v604, %v339
        %v617 = vmul.f32 %v604, %v340
        %v618 = vmul.f32 %v608, %v341
        %v619 = vmul.f32 %v608, %v342
        %v620 = vmul.f32 %v612, %v343
        %v621 = vmul.f32 %v612, %v344
        %v622 = vadd.f32 %v590, %v614
        %v623 = vadd.f32 %v591, %v615
        %v624 = vadd.f32 %v592, %v616
        %v625 = vadd.f32 %v593, %v617
        %v626 = vadd.f32 %v594, %v618
        %v627 = vadd.f32 %v595, %v619
        %v628 = vadd.f32 %v596, %v620
        %v629 = vadd.f32 %v597, %v621
        %630 = vst [vmem:[%s292] sm:$0xff] %v622
        %631 = vst [vmem:[%s292 + $0x8] sm:$0xff] %v623
        %632 = vst [vmem:[%s292 + $0x10] sm:$0xff] %v624
        %633 = vst [vmem:[%s292 + $0x18] sm:$0xff] %v625
        %634 = vst [vmem:[%s292 + $0x20] sm:$0xff] %v626
        %635 = vst [vmem:[%s292 + $0x28] sm:$0xff] %v627
        %636 = vst [vmem:[%s292 + $0x30] sm:$0xff] %v628
        %637 = vst [vmem:[%s292 + $0x38] sm:$0xff] %v629
        %s638 = sand.u32 %s131, 1
        %s639 = scalar_lea.sflag [#allocation4], %s638
        %s640 = sand.u32 %s131, 1
        %s641 = smul.addr %s640, 64
        %s642 = scalar_lea.vmem [#allocation8], %s641
        // Predicated region
        $region49: #{tpu_custom_call.1} parent=35 // pred_check
          %p643 = pneg %p141
        $region50: #{tpu_custom_call.1} parent=35 // pred_check_branch
          %645 = sbr.rel (%p643) target = $region52
        $region51: #{tpu_custom_call.1} parent=35 // pred_region
          %s647 = ssub.s32 1024, 1024
          %648 = vsyncadd %s639, %s647
          %s649 = smul.addr %s24, 8
          %s650 = smul.addr %s649, 128
          %s651 = scalar_lea.hbm %s4, %s650
          %s652 = sshll.u32 %s642, 4
          %s653 = int_to_ptr.vmem [resolvable:$true] %s652
          %658 = dma.vmem_to_hbm [thread:$0]  %s653, 1024, %s651, %s639, 256, 256, 16
        $region52: #{tpu_custom_call.1} parent=35 // pred_fallthru
          _
      $region36: #{tpu_custom_call.1} parent=5 // pred_fallthru
        _
      %p659 = scmp.le.s32.totalorder 2, %s19
      // Predicated region
      $region53: #{tpu_custom_call.1} parent=5 // pred_check
        %p660 = pneg %p659
      $region54: #{tpu_custom_call.1} parent=5 // pred_check_branch
        %662 = sbr.rel (%p660) target = $region56
      $region55: #{tpu_custom_call.1} parent=5 // pred_region
        %s663 = ssub.s32 %s19, 2
        // Predicated region
        $region57: #{tpu_custom_call.1} parent=55 // pred_check
          %p664 = pneg %p147
        $region58: #{tpu_custom_call.1} parent=55 // pred_check_branch
          %666 = sbr.rel (%p664) target = $region60
        $region59: #{tpu_custom_call.1} parent=55 // pred_region
          %s667 = sand.u32 %s132, 1
          %s668 = scalar_lea.sflag [#allocation4], %s667
          %s669 = sand.u32 %s132, 1
          %s670 = smul.addr %s669, 64
          %s671 = scalar_lea.vmem [#allocation8], %s670
          %672 = dma.done %s668, 1024
        $region60: #{tpu_custom_call.1} parent=55 // pred_fallthru
          _
      $region56: #{tpu_custom_call.1} parent=5 // pred_fallthru
        _
    $region6: #{tpu_custom_call.1} parent=1 // loop_footer
      %s23 = sadd.s32 1, %s19
    $region7: #{tpu_custom_call.1} parent=1 // loop_footer_branch
      %18 = sbr.rel target = $region3
    $region8: #{tpu_custom_call.1} parent=1 // loop_exit
      _
    %673 = vsyncpa [#allocation3], 1
    %s674 = scalar_lea.sflag [#allocation3], 1
    %675 = vsyncpa %s674, 1
    %676 = vsyncpa [#allocation6], 1
    %s677 = scalar_lea.sflag [#allocation6], 1
    %678 = vsyncpa %s677, 1
    %679 = vsyncpa [#allocation4], 1
    %s680 = scalar_lea.sflag [#allocation4], 1
    %681 = vsyncpa %s680, 1

</llo_original>
